<compile_context>
chip_gen: v7x
topology: tpu7x:2x2x1
jax: 0.10.0
libtpu: 0.0.40
codegen_flags: <defaults>
</compile_context>

<pallas_src>
import jax
import jax.numpy as jnp
from jax.experimental import pallas as pl
from jax.experimental.pallas import tpu as pltpu


def _round_up(x: int, m: int) -> int:
    return ((x + m - 1) // m) * m


def _make_glm_kernel(num_hidden: int, tile_rows: int, n_rows: int):
    """Builds the Pallas kernel body for one row-tile of the GLM."""

    def kernel(*refs):
        if num_hidden > 0:
            (cov_ref, hw_ref, hb_ref, ow_ref, ob_ref, lab_ref,
             lam_ref, loss_ref) = refs
        else:
            (cov_ref, ow_ref, ob_ref, lab_ref, lam_ref, loss_ref) = refs
            hw_ref = hb_ref = None

        # Hidden stack: Linear(D, D) + Tanh, statically unrolled.
        # Matmuls run in the input dtype (f32 or bf16) with f32 accumulation;
        # activation math stays in f32 (v5e VPU/EUP have no bf16).
        x = cov_ref[...]                                        # [TN, D]
        for l in range(num_hidden):
            xd = x.astype(hw_ref.dtype)
            h = jnp.dot(xd, hw_ref[l, :, :],
                        preferred_element_type=jnp.float32)     # [TN, D] f32
            x = jnp.tanh(h + hb_ref[l, :, :])                   # f32

        xf = x.astype(jnp.float32)

        # Output head Linear(D, 1): width-1 matmul would waste the MXU and pay
        # the result-FIFO drain, so do it on the VPU/XLU instead.
        ow_row = ow_ref[...].astype(jnp.float32)                # [1, D]
        log_lam = (jnp.sum(xf * ow_row, axis=-1, keepdims=True)
                   + ob_ref[0, 0])                              # [TN, 1]
        lam_ref[...] = log_lam

        # Poisson loss partial sum for this tile; mask rows past the true N
        # (padding rows would otherwise contribute exp(0) - 0 = 1 each).
        row = (pl.program_id(0) * tile_rows
               + jax.lax.broadcasted_iota(jnp.int32, (tile_rows, 1), 0))
        valid = row < n_rows
        y = lab_ref[...].astype(jnp.float32)                    # [TN, 1]
        z = jnp.exp(log_lam) - y * log_lam
        z = jnp.where(valid, z, 0.0)
        loss_ref[...] = jnp.sum(z, axis=0, keepdims=True)[None]  # (1, 1, 1)

    return kernel


def glm_forward(covariates, hidden_weights, hidden_biases, out_weight, out_bias,
                labels, *, input_dtype=jnp.float32, tile_rows_max=4096):
    """Pallas-backed forward of glmModel.

    Args:
      covariates:     [N, D] float
      hidden_weights: list of L arrays [D, D] in PyTorch (out, in) convention
      hidden_biases:  list of L arrays [D]
      out_weight:     [1, D]  (PyTorch (out, in) convention)
      out_bias:       [1]
      labels:         [N, 1] (or [N]) float
      input_dtype:    dtype used to stream covariates / hidden weights
                      (jnp.float32 or jnp.bfloat16); accumulation is f32.
      tile_rows_max:  max rows per grid step.

    Returns dict with 'loss' (scalar) and 'lambda' ([N, 1]).
    """
    covariates = jnp.asarray(covariates)
    N, D = covariates.shape
    L = len(hidden_weights)

    # Row tiling: multiple of 16 (bf16 sublane packing), padded batch.
    tile_rows = int(min(int(tile_rows_max), _round_up(N, 16)))
    tile_rows = _round_up(tile_rows, 16)
    padded_n = _round_up(N, tile_rows)
    num_tiles = padded_n // tile_rows

    cov = covariates.astype(input_dtype)
    lab = jnp.asarray(labels, jnp.float32).reshape(N, 1)
    if padded_n != N:
        cov = jnp.pad(cov, ((0, padded_n - N), (0, 0)))
        lab = jnp.pad(lab, ((0, padded_n - N), (0, 0)))

    # Output head kept as a [1, D] row (used with a VPU multiply + reduce).
    ow = jnp.asarray(out_weight, jnp.float32).reshape(1, D)
    ob = jnp.asarray(out_bias, jnp.float32).reshape(1, 1)        # scalar -> SMEM

    cov_spec = pl.BlockSpec((tile_rows, D), lambda i: (i, 0))
    col_spec = pl.BlockSpec((tile_rows, 1), lambda i: (i, 0))
    ow_spec = pl.BlockSpec((1, D), lambda i: (0, 0))
    ob_spec = pl.BlockSpec(memory_space=pltpu.MemorySpace.SMEM)

    if L > 0:
        # Pre-transpose to (in, out) so the kernel does plain x @ W; stack all
        # layers so the whole weight stack stays VMEM-resident across tiles.
        hw = jnp.stack([jnp.asarray(w, jnp.float32).T for w in hidden_weights])
        hw = hw.astype(input_dtype)                              # [L, D, D]
        hb = jnp.stack([jnp.asarray(b, jnp.float32) for b in hidden_biases])
        hb = hb[:, None, :]                                      # [L, 1, D] f32
        inputs = (cov, hw, hb, ow, ob, lab)
        in_specs = [
            cov_spec,
            pl.BlockSpec((L, D, D), lambda i: (0, 0, 0)),
            pl.BlockSpec((L, 1, D), lambda i: (0, 0, 0)),
            ow_spec,
            ob_spec,
            col_spec,
        ]
        weight_bytes = hw.size * hw.dtype.itemsize + hb.size * 4
    else:
        inputs = (cov, ow, ob, lab)
        in_specs = [cov_spec, ow_spec, ob_spec, col_spec]
        weight_bytes = 0

    kernel = _make_glm_kernel(L, tile_rows, N)

    cost = pl.CostEstimate(
        flops=int(2 * N * D * D * L + 2 * N * D),
        transcendentals=int(N * D * L + N),
        bytes_accessed=int(cov.size * cov.dtype.itemsize + lab.size * 4
                           + weight_bytes + ow.size * 4 + 4
                           + padded_n * 4 + num_tiles * 4),
    )

    lam_padded, loss_parts = pl.pallas_call(
        kernel,
        out_shape=(
            jax.ShapeDtypeStruct((padded_n, 1), jnp.float32),    # log_lambda
            jax.ShapeDtypeStruct((num_tiles, 1, 1), jnp.float32),  # loss partials
        ),
        grid=(num_tiles,),
        in_specs=in_specs,
        out_specs=(
            col_spec,
            pl.BlockSpec((1, 1, 1), lambda i: (i, 0, 0)),
        ),
        compiler_params=pltpu.CompilerParams(
            dimension_semantics=("parallel",),     # megacore sharding on v7x
            vmem_limit_bytes=48 * 1024 * 1024,     # < 64 MiB physical on v7x
        ),
        cost_estimate=cost,
    )(*inputs)

    log_lam = lam_padded[:N]
    loss = jnp.sum(loss_parts) / jnp.float32(N)
    return {"loss": loss, "lambda": log_lam}


def _reference_forward(covariates, hidden_weights, hidden_biases, out_weight,
                       out_bias, labels):
    x = jnp.asarray(covariates, jnp.float32)
    for w, b in zip(hidden_weights, hidden_biases):
        x = jnp.tanh(x @ w.T + b)
    log_lam = x @ out_weight.T + out_bias
    labels = jnp.asarray(labels, jnp.float32).reshape(-1, 1)
    loss = jnp.mean(jnp.exp(log_lam) - labels * log_lam)
    return {"loss": loss, "lambda": log_lam}


if __name__ == "__main__":
    # Small deterministic problem: batch N=8, input_dim D=32, 2 hidden layers.
    N, D, L = 8, 32, 2

    key = jax.random.PRNGKey(0)
    keys = jax.random.split(key, 3 + 2 * L)

    covariates = jax.random.normal(keys[0], (N, D), dtype=jnp.float32)
    labels = jax.random.poisson(keys[1], lam=2.0, shape=(N, 1)).astype(jnp.float32)

    # PyTorch nn.Linear default init: U(-1/sqrt(fan_in), 1/sqrt(fan_in)).
    bound = float(1.0 / jnp.sqrt(jnp.float32(D)))
    hidden_weights, hidden_biases = [], []
    for i in range(L):
        hidden_weights.append(
            jax.random.uniform(keys[2 + 2 * i], (D, D), jnp.float32, -bound, bound))
        hidden_biases.append(
            jax.random.uniform(keys[3 + 2 * i], (D,), jnp.float32, -bound, bound))
    out_weight = jax.random.uniform(keys[2 + 2 * L], (1, D), jnp.float32, -bound, bound)
    out_bias = jnp.zeros((1,), jnp.float32)

    ref = _reference_forward(covariates, hidden_weights, hidden_biases,
                             out_weight, out_bias, labels)

    # f32 path (tight tolerance).
    out = glm_forward(covariates, hidden_weights, hidden_biases, out_weight,
                      out_bias, labels)
    jax.block_until_ready(out)
    assert out["lambda"].shape == (N, 1)
    assert jnp.allclose(out["lambda"], ref["lambda"], atol=1e-5, rtol=1e-5)
    assert jnp.allclose(out["loss"], ref["loss"], atol=1e-5, rtol=1e-5)

    # bf16 streaming path (halves HBM bytes for covariates / hidden weights).
    out_bf16 = glm_forward(covariates, hidden_weights, hidden_biases, out_weight,
                           out_bias, labels, input_dtype=jnp.bfloat16)
    jax.block_until_ready(out_bf16)
    assert jnp.allclose(out_bf16["lambda"], ref["lambda"], atol=5e-2, rtol=5e-2)
    assert jnp.allclose(out_bf16["loss"], ref["loss"], atol=5e-2, rtol=5e-2)

    # Zero-hidden-layer GLM (pure Poisson regression head).
    out0 = glm_forward(covariates, [], [], out_weight, out_bias, labels)
    ref0 = _reference_forward(covariates, [], [], out_weight, out_bias, labels)
    assert jnp.allclose(out0["lambda"], ref0["lambda"], atol=1e-5, rtol=1e-5)
    assert jnp.allclose(out0["loss"], ref0["loss"], atol=1e-5, rtol=1e-5)

    # Multi-tile + row-masking path (N not a multiple of the row tile).
    N2 = 100
    cov2 = jax.random.normal(jax.random.PRNGKey(1), (N2, D), dtype=jnp.float32)
    lab2 = jax.random.poisson(jax.random.PRNGKey(2), lam=1.5,
                              shape=(N2, 1)).astype(jnp.float32)
    out2 = glm_forward(cov2, hidden_weights, hidden_biases, out_weight, out_bias,
                       lab2, tile_rows_max=32)
    jax.block_until_ready(out2)
    ref2 = _reference_forward(cov2, hidden_weights, hidden_biases, out_weight,
                              out_bias, lab2)
    assert out2["lambda"].shape == (N2, 1)
    assert jnp.allclose(out2["lambda"], ref2["lambda"], atol=1e-5, rtol=1e-5)
    assert jnp.allclose(out2["loss"], ref2["loss"], atol=1e-5, rtol=1e-5)

    print("KERNEL_OK")
</pallas_src>

<mosaic_0001>
module attributes {stable_mosaic.version = 11 : i64} {
  func.func @kernel(%arg0: i32, %arg1: memref<16x32xf32, #tpu.memory_space<vmem>>, %arg2: memref<2x32x32xf32, #tpu.memory_space<vmem>>, %arg3: memref<2x1x32xf32, #tpu.memory_space<vmem>>, %arg4: memref<1x32xf32, #tpu.memory_space<vmem>>, %arg5: memref<1x1xf32, #tpu.memory_space<smem>>, %arg6: memref<16x1xf32, #tpu.memory_space<vmem>>, %arg7: memref<16x1xf32, #tpu.memory_space<vmem>>, %arg8: memref<1x1x1xf32, #tpu.memory_space<vmem>>) attributes {dimension_semantics = [#tpu.dimension_semantics<parallel>], iteration_bounds = array<i64: 1>, scalar_prefetch = 0 : i64, scratch_operands = 0 : i64, tpu.core_type = #tpu.core_type<tc>, window_params = [{transform_indices = @transform_0, window_bounds = array<i64: 16, 32>}, {pipeline_mode = #tpu.pipeline_mode<synchronous>, transform_indices = @transform_1, window_bounds = array<i64: 2, 32, 32>}, {pipeline_mode = #tpu.pipeline_mode<synchronous>, transform_indices = @transform_2, window_bounds = array<i64: 2, 1, 32>}, {pipeline_mode = #tpu.pipeline_mode<synchronous>, transform_indices = @transform_3, window_bounds = array<i64: 1, 32>}, {transform_indices = @transform_4, window_bounds = array<i64: 1, 1>}, {transform_indices = @transform_5, window_bounds = array<i64: 16, 1>}, {transform_indices = @transform_6, window_bounds = array<i64: 16, 1>}, {transform_indices = @transform_7, window_bounds = array<i64: 1, 1, 1>}]} {
    %c0 = arith.constant 0 : index
    %c0_0 = arith.constant 0 : index
    %0 = vector.load %arg1[%c0, %c0_0] : memref<16x32xf32, #tpu.memory_space<vmem>>, vector<16x32xf32>
    %c0_1 = arith.constant 0 : index
    %c0_2 = arith.constant 0 : index
    %c0_3 = arith.constant 0 : index
    %1 = vector.load %arg2[%c0_1, %c0_2, %c0_3] : memref<2x32x32xf32, #tpu.memory_space<vmem>>, vector<1x32x32xf32>
    %2 = vector.shape_cast %1 : vector<1x32x32xf32> to vector<32x32xf32>
    %cst = arith.constant dense<0.000000e+00> : vector<16x32xf32>
    %3 = tpu.matmul %0, %2, %cst {dimension_numbers = #tpu.dot_dimension_numbers<[1], [0], [0], [1], [0, 0, 1, 1], [], []>} : vector<16x32xf32>, vector<32x32xf32>, vector<16x32xf32> -> vector<16x32xf32>
    %c0_4 = arith.constant 0 : index
    %c0_5 = arith.constant 0 : index
    %c0_6 = arith.constant 0 : index
    %4 = vector.load %arg3[%c0_4, %c0_5, %c0_6] : memref<2x1x32xf32, #tpu.memory_space<vmem>>, vector<1x1x32xf32>
    %5 = vector.shape_cast %4 : vector<1x1x32xf32> to vector<1x32xf32>
    %6 = vector.broadcast %5 : vector<1x32xf32> to vector<16x32xf32>
    %7 = arith.addf %3, %6 : vector<16x32xf32>
    %8 = math.tanh %7 : vector<16x32xf32>
    %c1 = arith.constant 1 : index
    %c0_7 = arith.constant 0 : index
    %c0_8 = arith.constant 0 : index
    %9 = vector.load %arg2[%c1, %c0_7, %c0_8] : memref<2x32x32xf32, #tpu.memory_space<vmem>>, vector<1x32x32xf32>
    %10 = vector.shape_cast %9 : vector<1x32x32xf32> to vector<32x32xf32>
    %cst_9 = arith.constant dense<0.000000e+00> : vector<16x32xf32>
    %11 = tpu.matmul %8, %10, %cst_9 {dimension_numbers = #tpu.dot_dimension_numbers<[1], [0], [0], [1], [0, 0, 1, 1], [], []>} : vector<16x32xf32>, vector<32x32xf32>, vector<16x32xf32> -> vector<16x32xf32>
    %c1_10 = arith.constant 1 : index
    %c0_11 = arith.constant 0 : index
    %c0_12 = arith.constant 0 : index
    %12 = vector.load %arg3[%c1_10, %c0_11, %c0_12] : memref<2x1x32xf32, #tpu.memory_space<vmem>>, vector<1x1x32xf32>
    %13 = vector.shape_cast %12 : vector<1x1x32xf32> to vector<1x32xf32>
    %14 = vector.broadcast %13 : vector<1x32xf32> to vector<16x32xf32>
    %15 = arith.addf %11, %14 : vector<16x32xf32>
    %16 = math.tanh %15 : vector<16x32xf32>
    %c0_13 = arith.constant 0 : index
    %c0_14 = arith.constant 0 : index
    %17 = vector.load %arg4[%c0_13, %c0_14] : memref<1x32xf32, #tpu.memory_space<vmem>>, vector<1x32xf32>
    %18 = vector.broadcast %17 : vector<1x32xf32> to vector<16x32xf32>
    %19 = arith.mulf %16, %18 : vector<16x32xf32>
    %cst_15 = arith.constant dense<0.000000e+00> : vector<16xf32>
    %20 = vector.multi_reduction <add>, %19, %cst_15 [1] : vector<16x32xf32> to vector<16xf32>
    %21 = vector.shape_cast %20 : vector<16xf32> to vector<16x1xf32>
    %c0_16 = arith.constant 0 : index
    %c0_17 = arith.constant 0 : index
    %22 = memref.load %arg5[%c0_16, %c0_17] : memref<1x1xf32, #tpu.memory_space<smem>>
    %23 = vector.broadcast %22 : f32 to vector<16x1xf32>
    %24 = arith.addf %21, %23 : vector<16x1xf32>
    %c0_18 = arith.constant 0 : index
    %c0_19 = arith.constant 0 : index
    %25 = vector.load %arg7[%c0_18, %c0_19] : memref<16x1xf32, #tpu.memory_space<vmem>>, vector<16x1xf32>
    tpu.vector_store %arg7[%c0_18, %c0_19], %24 {strides = array<i32>} : memref<16x1xf32, #tpu.memory_space<vmem>>, vector<16x1xf32>,
    %c16_i32 = arith.constant 16 : i32
    %26 = arith.muli %arg0, %c16_i32 : i32
    %27 = tpu.iota {dimensions = array<i32: 0>} : vector<16x1xi32>
    %28 = vector.broadcast %26 : i32 to vector<16x1xi32>
    %29 = arith.addi %28, %27 : vector<16x1xi32>
    %c8_i32 = arith.constant 8 : i32
    %30 = vector.broadcast %c8_i32 : i32 to vector<16x1xi32>
    %31 = arith.cmpi slt, %29, %30 : vector<16x1xi32>
    %c0_20 = arith.constant 0 : index
    %c0_21 = arith.constant 0 : index
    %32 = vector.load %arg6[%c0_20, %c0_21] : memref<16x1xf32, #tpu.memory_space<vmem>>, vector<16x1xf32>
    %33 = math.exp %24 : vector<16x1xf32>
    %34 = arith.mulf %32, %24 : vector<16x1xf32>
    %35 = arith.subf %33, %34 : vector<16x1xf32>
    %cst_22 = arith.constant 0.000000e+00 : f32
    %36 = vector.broadcast %cst_22 : f32 to vector<16x1xf32>
    %37 = arith.select %31, %35, %36 : vector<16x1xi1>, vector<16x1xf32>
    %cst_23 = arith.constant dense<0.000000e+00> : vector<1xf32>
    %38 = vector.multi_reduction <add>, %37, %cst_23 [0] : vector<16x1xf32> to vector<1xf32>
    %39 = vector.shape_cast %38 : vector<1xf32> to vector<1x1xf32>
    %40 = vector.shape_cast %39 : vector<1x1xf32> to vector<1x1x1xf32>
    %c0_24 = arith.constant 0 : index
    %c0_25 = arith.constant 0 : index
    %c0_26 = arith.constant 0 : index
    %41 = vector.load %arg8[%c0_24, %c0_25, %c0_26] : memref<1x1x1xf32, #tpu.memory_space<vmem>>, vector<1x1x1xf32>
    tpu.vector_store %arg8[%c0_24, %c0_25, %c0_26], %40 {strides = array<i32>} : memref<1x1x1xf32, #tpu.memory_space<vmem>>, vector<1x1x1xf32>,
    return
  }
  func.func @transform_0(%arg0: i32) -> (i32, i32) {
    %c0_i32 = arith.constant 0 : i32
    %c0_i32_0 = arith.constant 0 : i32
    return %arg0, %c0_i32 : i32, i32
  }
  func.func @transform_1(%arg0: i32) -> (i32, i32, i32) {
    %c0_i32 = arith.constant 0 : i32
    %c0_i32_0 = arith.constant 0 : i32
    %c0_i32_1 = arith.constant 0 : i32
    %c0_i32_2 = arith.constant 0 : i32
    return %c0_i32, %c0_i32_0, %c0_i32_1 : i32, i32, i32
  }
  func.func @transform_2(%arg0: i32) -> (i32, i32, i32) {
    %c0_i32 = arith.constant 0 : i32
    %c0_i32_0 = arith.constant 0 : i32
    %c0_i32_1 = arith.constant 0 : i32
    %c0_i32_2 = arith.constant 0 : i32
    return %c0_i32, %c0_i32_0, %c0_i32_1 : i32, i32, i32
  }
  func.func @transform_3(%arg0: i32) -> (i32, i32) {
    %c0_i32 = arith.constant 0 : i32
    %c0_i32_0 = arith.constant 0 : i32
    %c0_i32_1 = arith.constant 0 : i32
    return %c0_i32, %c0_i32_0 : i32, i32
  }
  func.func @transform_4(%arg0: i32) -> (i32, i32) {
    %c0_i32 = arith.constant 0 : i32
    %c0_i32_0 = arith.constant 0 : i32
    %c0_i32_1 = arith.constant 0 : i32
    return %c0_i32, %c0_i32_0 : i32, i32
  }
  func.func @transform_5(%arg0: i32) -> (i32, i32) {
    %c0_i32 = arith.constant 0 : i32
    %c0_i32_0 = arith.constant 0 : i32
    return %arg0, %c0_i32 : i32, i32
  }
  func.func @transform_6(%arg0: i32) -> (i32, i32) {
    %c0_i32 = arith.constant 0 : i32
    %c0_i32_0 = arith.constant 0 : i32
    return %arg0, %c0_i32 : i32, i32
  }
  func.func @transform_7(%arg0: i32) -> (i32, i32, i32) {
    %c0_i32 = arith.constant 0 : i32
    %c0_i32_0 = arith.constant 0 : i32
    %c0_i32_1 = arith.constant 0 : i32
    return %arg0, %c0_i32, %c0_i32_0 : i32, i32, i32
  }
}

</mosaic_0001>

<llo_original>
// kernel: tpu_custom_call.1
$region0: #{tpu_custom_call.1}
  #allocation0 [shape = 'u32[]', space=smem, size = 0x4, offset = 0x4, fixed_abs, tag = 'smem constant byte address 0x4 - core index']
  #allocation1 [shape = 'u32[144,128]{1,0:T(1,128)}', space=vmem, size = 0x12000, scoped, tag = 'internal scratch']
  #allocation2 [shape = 'f32[1,1]{1,0:T(1,128)S(6)}', space=smem, size = 0x200, scoped, tag = 'scoped memory for tpu_custom_call.1']
  %s0 = inlined_call_operand.vmem [shape: f32[16,32], index: 0, kind: input, shape index: {}]
  %s1 = inlined_call_operand.hbm [shape: f32[2,32,32], index: 1, kind: input, shape index: {}]
  %s2 = inlined_call_operand.vmem [shape: f32[2,1,32], index: 2, kind: input, shape index: {}]
  %s3 = inlined_call_operand.vmem [shape: f32[1,32], index: 3, kind: input, shape index: {}]
  %s4 = inlined_call_operand.<no memory space> [shape: f32[1,1], index: 4, kind: input, shape index: {}]
  %s5 = inlined_call_operand.vmem [shape: f32[16,1], index: 5, kind: input, shape index: {}]
  %s6 = inlined_call_operand.vmem [shape: f32[16,1], index: 6, kind: output, shape index: {0}]
  %s7 = inlined_call_operand.hbm [shape: f32[1,1,1], index: 7, kind: output, shape index: {1}]
  %8 = xla_tuple %s6, %s7
  %s9 = sld [smem:[#allocation0]]
  $region46: #{tpu_custom_call.1} parent=0
    _
  %s11 = ssub.s32 1, %s9
  %s12 = scalar_select 0, %s11, %s9
  %13 = sst [smem:[#allocation2]] %s4
  $region1: #{tpu_custom_call.1} parent=0
    #allocation3 [shape = 'u8[32768]{0}', space=vmem, size = 0x8000, scoped, tag = 'input window, operand 1, single buffered']
    #allocation4 [shape = 's32[1]{0}', space=sflag, size = 0x4, scoped, tag = 'scoped memory for tpu_custom_call.1']
    #allocation5 [shape = 's32[1]{0}', space=sflag, size = 0x4, scoped, tag = 'scoped memory for tpu_custom_call.1']
    #allocation6 [shape = 'u8[512]{0}', space=vmem, size = 0x400, scoped, tag = 'output window, operand 1, single buffered']
    %14 = vsyncpa [#allocation4], 0
    %15 = vsyncpa [#allocation5], 0
    // Predicated region
    $region2: #{tpu_custom_call.1} parent=1 // pred_check
      _
    $region3: #{tpu_custom_call.1} parent=1 // pred_check_branch
      %17 = sbr.rel (0) target = $region5
    $region4: #{tpu_custom_call.1} parent=1 // pred_region
      _
    $region5: #{tpu_custom_call.1} parent=1 // pred_fallthru
      _
    // Predicated region
    $region6: #{tpu_custom_call.1} parent=1 // pred_check
      _
    $region7: #{tpu_custom_call.1} parent=1 // pred_check_branch
      %19 = sbr.rel (0) target = $region9
    $region8: #{tpu_custom_call.1} parent=1 // pred_region
      %s21 = ssub.s32 1024, 1024
      %22 = vsyncadd [#allocation4], %s21
      %s23 = sshll.u32 [#allocation3], 4
      %s24 = int_to_ptr.vmem [resolvable:$true] %s23
      %29 = dma.hbm_to_vmem [thread:$0]  %s1, 1024, %s24, [#allocation4], 128, 128, 8
    $region9: #{tpu_custom_call.1} parent=1 // pred_fallthru
      _
    // Predicated region
    $region10: #{tpu_custom_call.1} parent=1 // pred_check
      _
    $region11: #{tpu_custom_call.1} parent=1 // pred_check_branch
      %31 = sbr.rel (0) target = $region13
    $region12: #{tpu_custom_call.1} parent=1 // pred_region
      _
    $region13: #{tpu_custom_call.1} parent=1 // pred_fallthru
      _
    // Predicated region
    $region14: #{tpu_custom_call.1} parent=1 // pred_check
      _
    $region15: #{tpu_custom_call.1} parent=1 // pred_check_branch
      %33 = sbr.rel (0) target = $region17
    $region16: #{tpu_custom_call.1} parent=1 // pred_region
      _
    $region17: #{tpu_custom_call.1} parent=1 // pred_fallthru
      _
    // Predicated region
    $region18: #{tpu_custom_call.1} parent=1 // pred_check
      _
    $region19: #{tpu_custom_call.1} parent=1 // pred_check_branch
      %35 = sbr.rel (0) target = $region21
    $region20: #{tpu_custom_call.1} parent=1 // pred_region
      _
    $region21: #{tpu_custom_call.1} parent=1 // pred_fallthru
      _
    // Predicated region
    $region22: #{tpu_custom_call.1} parent=1 // pred_check
      _
    $region23: #{tpu_custom_call.1} parent=1 // pred_check_branch
      %37 = sbr.rel (0) target = $region25
    $region24: #{tpu_custom_call.1} parent=1 // pred_region
      _
    $region25: #{tpu_custom_call.1} parent=1 // pred_fallthru
      _
    // Predicated region
    $region26: #{tpu_custom_call.1} parent=1 // pred_check
      _
    $region27: #{tpu_custom_call.1} parent=1 // pred_check_branch
      %39 = sbr.rel (0) target = $region29
    $region28: #{tpu_custom_call.1} parent=1 // pred_region
      %40 = dma.done [#allocation4], 1024
    $region29: #{tpu_custom_call.1} parent=1 // pred_fallthru
      _
    %v41 = vld [vmem:[%s0] sm:$0xff]
    %v42 = vld [vmem:[%s0 + $0x8] sm:$0xff]
    %v43 = vld [vmem:[#allocation3] sm:$0xff]
    %v44 = vld [vmem:[#allocation3 + $0x8] sm:$0xff]
    %v45 = vld [vmem:[#allocation3 + $0x10] sm:$0xff]
    %v46 = vld [vmem:[#allocation3 + $0x18] sm:$0xff]
    %v47 = vld [vmem:[%s2] sm:$0x1]
    %v49 = vlaneseq
    %v50 = vshrl.u32 %v49, 7
    %v51 = vsub.s32 0, %v50
    %v52 = vrot.slane %v47, %v51
    %vm54 = vcmask 261120
    %v56 = vsel %vm54, %v41, 0
    %v59 = vsel %vm54, %v42, 0
    %61 = vmatprep.subr.mxu0 0.0
    %62 = vmatpush1.msra.mxu0 %v43
    %63 = vmatprep.subr.mxu0 0.0
    %64 = vmatpush1.msra.mxu0 %v44
    %65 = vmatprep.subr.mxu0 0.0
    %66 = vmatpush1.msra.mxu0 %v45
    %67 = vmatprep.subr.mxu0 0.0
    %68 = vmatpush1.msra.mxu0 %v46
    %69 = vmatprep.subr.mxu0 0.0
    %70 = vmatpush1.msra.mxu0 0.0
    %71 = vmatprep.subr.mxu0 0.0
    %72 = vmatpush1.msra.mxu0 0.0
    %73 = vmatprep.subr.mxu0 0.0
    %74 = vmatpush1.msra.mxu0 0.0
    %75 = vmatprep.subr.mxu0 0.0
    %76 = vmatpush1.msra.mxu0 0.0
    %77 = vmatprep.subr.mxu0 0.0
    %78 = vmatpush1.msra.mxu0 0.0
    %79 = vmatprep.subr.mxu0 0.0
    %80 = vmatpush1.msra.mxu0 0.0
    %81 = vmatprep.subr.mxu0 0.0
    %82 = vmatpush1.msra.mxu0 0.0
    %83 = vmatprep.subr.mxu0 0.0
    %84 = vmatpush1.msra.mxu0 0.0
    %85 = vmatprep.subr.mxu0 0.0
    %86 = vmatpush1.msra.mxu0 0.0
    %87 = vmatprep.subr.mxu0 0.0
    %88 = vmatpush1.msra.mxu0 0.0
    %89 = vmatprep.subr.mxu0 0.0
    %90 = vmatpush1.msra.mxu0 0.0
    %91 = vmatprep.subr.mxu0 0.0
    %92 = vmatpush1.msra.mxu0 0.0
    %93 = vmatprep.subr.mxu0 0.0
    %94 = vmatpush1.msra.mxu0 0.0
    %95 = vmatprep.subr.mxu0 0.0
    %96 = vmatpush1.msra.mxu0 0.0
    %97 = vmatprep.subr.mxu0 0.0
    %98 = vmatpush1.msra.mxu0 0.0
    %99 = vmatprep.subr.mxu0 0.0
    %100 = vmatpush1.msra.mxu0 0.0
    %101 = vmatprep.subr.mxu0 0.0
    %102 = vmatpush1.msra.mxu0 0.0
    %103 = vmatprep.subr.mxu0 0.0
    %104 = vmatpush1.msra.mxu0 0.0
    %105 = vmatprep.subr.mxu0 0.0
    %106 = vmatpush1.msra.mxu0 0.0
    %107 = vmatprep.subr.mxu0 0.0
    %108 = vmatpush1.msra.mxu0 0.0
    %109 = vmatprep.subr.mxu0 0.0
    %110 = vmatpush1.msra.mxu0 0.0
    %111 = vmatprep.subr.mxu0 0.0
    %112 = vmatpush1.msra.mxu0 0.0
    %113 = vmatprep.subr.mxu0 0.0
    %114 = vmatpush1.msra.mxu0 0.0
    %115 = vmatprep.subr.mxu0 0.0
    %116 = vmatpush1.msra.mxu0 0.0
    %117 = vmatprep.subr.mxu0 0.0
    %118 = vmatpush1.msra.mxu0 0.0
    %119 = vmatprep.subr.mxu0 0.0
    %120 = vmatpush1.msra.mxu0 0.0
    %121 = vmatprep.subr.mxu0 0.0
    %122 = vmatpush1.msra.mxu0 0.0
    %123 = vmatprep.subr.mxu0 0.0
    %124 = vmatpush1.msra.mxu0 0.0
    %125 = vmatprep.mubr.f32.mxu0 0.0
    %126 = vmatmul.mubr.f32.gmra.mrb[0].mxu0 %v56
    %v127 = vpop.f32.mrb[0].mxu0
    %v128 = vadd.f32 %v52, %v127
    %v129 = vpop.f32.mrb[0].mxu0
    %130 = vmatprep.mubr.f32.mxu0 0.0
    %131 = vmatmul.mubr.f32.gmra.mrb[0].mxu0 %v59
    %v132 = vpop.f32.mrb[0].mxu0
    %v133 = vadd.f32 %v52, %v132
    %v134 = vpop.f32.mrb[0].mxu0
    %135 = vdwg.mxu0
    %v136 = vtanh.pop %v128
    %v137 = vtanh.pop %v133
    %s138 = scalar_lea.vmem [#allocation3], 32
    %v139 = vld [vmem:[%s138] sm:$0xff]
    %v140 = vld [vmem:[%s138 + $0x8] sm:$0xff]
    %v141 = vld [vmem:[%s138 + $0x10] sm:$0xff]
    %v142 = vld [vmem:[%s138 + $0x18] sm:$0xff]
    %s143 = scalar_lea.vmem %s2, 1
    %v144 = vld [vmem:[%s143] sm:$0x1]
    %v146 = vlaneseq
    %v147 = vshrl.u32 %v146, 7
    %v148 = vsub.s32 0, %v147
    %v149 = vrot.slane %v144, %v148
    %v152 = vsel %vm54, %v136, 0
    %v155 = vsel %vm54, %v137, 0
    %157 = vmatprep.subr.mxu0 0.0
    %158 = vmatpush1.msra.mxu0 %v139
    %159 = vmatprep.subr.mxu0 0.0
    %160 = vmatpush1.msra.mxu0 %v140
    %161 = vmatprep.subr.mxu0 0.0
    %162 = vmatpush1.msra.mxu0 %v141
    %163 = vmatprep.subr.mxu0 0.0
    %164 = vmatpush1.msra.mxu0 %v142
    %165 = vmatprep.subr.mxu0 0.0
    %166 = vmatpush1.msra.mxu0 0.0
    %167 = vmatprep.subr.mxu0 0.0
    %168 = vmatpush1.msra.mxu0 0.0
    %169 = vmatprep.subr.mxu0 0.0
    %170 = vmatpush1.msra.mxu0 0.0
    %171 = vmatprep.subr.mxu0 0.0
    %172 = vmatpush1.msra.mxu0 0.0
    %173 = vmatprep.subr.mxu0 0.0
    %174 = vmatpush1.msra.mxu0 0.0
    %175 = vmatprep.subr.mxu0 0.0
    %176 = vmatpush1.msra.mxu0 0.0
    %177 = vmatprep.subr.mxu0 0.0
    %178 = vmatpush1.msra.mxu0 0.0
    %179 = vmatprep.subr.mxu0 0.0
    %180 = vmatpush1.msra.mxu0 0.0
    %181 = vmatprep.subr.mxu0 0.0
    %182 = vmatpush1.msra.mxu0 0.0
    %183 = vmatprep.subr.mxu0 0.0
    %184 = vmatpush1.msra.mxu0 0.0
    %185 = vmatprep.subr.mxu0 0.0
    %186 = vmatpush1.msra.mxu0 0.0
    %187 = vmatprep.subr.mxu0 0.0
    %188 = vmatpush1.msra.mxu0 0.0
    %189 = vmatprep.subr.mxu0 0.0
    %190 = vmatpush1.msra.mxu0 0.0
    %191 = vmatprep.subr.mxu0 0.0
    %192 = vmatpush1.msra.mxu0 0.0
    %193 = vmatprep.subr.mxu0 0.0
    %194 = vmatpush1.msra.mxu0 0.0
    %195 = vmatprep.subr.mxu0 0.0
    %196 = vmatpush1.msra.mxu0 0.0
    %197 = vmatprep.subr.mxu0 0.0
    %198 = vmatpush1.msra.mxu0 0.0
    %199 = vmatprep.subr.mxu0 0.0
    %200 = vmatpush1.msra.mxu0 0.0
    %201 = vmatprep.subr.mxu0 0.0
    %202 = vmatpush1.msra.mxu0 0.0
    %203 = vmatprep.subr.mxu0 0.0
    %204 = vmatpush1.msra.mxu0 0.0
    %205 = vmatprep.subr.mxu0 0.0
    %206 = vmatpush1.msra.mxu0 0.0
    %207 = vmatprep.subr.mxu0 0.0
    %208 = vmatpush1.msra.mxu0 0.0
    %209 = vmatprep.subr.mxu0 0.0
    %210 = vmatpush1.msra.mxu0 0.0
    %211 = vmatprep.subr.mxu0 0.0
    %212 = vmatpush1.msra.mxu0 0.0
    %213 = vmatprep.subr.mxu0 0.0
    %214 = vmatpush1.msra.mxu0 0.0
    %215 = vmatprep.subr.mxu0 0.0
    %216 = vmatpush1.msra.mxu0 0.0
    %217 = vmatprep.subr.mxu0 0.0
    %218 = vmatpush1.msra.mxu0 0.0
    %219 = vmatprep.subr.mxu0 0.0
    %220 = vmatpush1.msra.mxu0 0.0
    %221 = vmatprep.mubr.f32.mxu0 0.0
    %222 = vmatmul.mubr.f32.gmra.mrb[0].mxu0 %v152
    %v223 = vpop.f32.mrb[0].mxu0
    %v224 = vadd.f32 %v149, %v223
    %v225 = vpop.f32.mrb[0].mxu0
    %226 = vmatprep.mubr.f32.mxu0 0.0
    %227 = vmatmul.mubr.f32.gmra.mrb[0].mxu0 %v155
    %v228 = vpop.f32.mrb[0].mxu0
    %v229 = vadd.f32 %v149, %v228
    %v230 = vpop.f32.mrb[0].mxu0
    %231 = vdwg.mxu0
    %v232 = vtanh.pop %v224
    %v233 = vtanh.pop %v229
    %v234 = vld [vmem:[%s3] sm:$0x1]
    %v236 = vlaneseq
    %v237 = vshrl.u32 %v236, 7
    %v238 = vsub.s32 0, %v237
    %v239 = vrot.slane %v234, %v238
    %v241 = vmul.f32 %v232, %v239
    %v242 = vmul.f32 %v233, %v239
    %v243 = vsel %vm54, %v241, 0.0
    %244 = vadd.xlane.f32.xlu0 %v243
    %v245 = vpop.xlane.xlu0 %244
    %v246 = vsel %vm54, %v242, 0.0
    %247 = vadd.xlane.f32.xlu0 %v246
    %v248 = vpop.xlane.xlu0 %247
    %s249 = sld [smem:[#allocation2]]
    %v250 = vstv %s249
    %v251 = vadd.f32 %v245, %v250
    %v252 = vadd.f32 %v248, %v250
    %vm253 = vcmask 7168
    %254 = vst.msk [vmem:[%s6] sm:$0xff] %vm253, %v251
    %255 = vst.msk [vmem:[%s6 + $0x8] sm:$0xff] %vm253, %v252
    %s256 = smul.u32 0, 16
    %v257 = vlaneseq
    %v258 = vshrl.u32 %v257, 7
    %v259 = vadd.s32 %v258, 8
    %v260 = vstv %s256
    %v261 = vadd.s32 %v260, %v258
    %v262 = vadd.s32 %v260, %v259
    %vm263 = vcmp.lt.s32.totalorder %v261, 8
    %vm264 = vcmp.lt.s32.totalorder %v262, 8
    %v265 = vld [vmem:[%s5] sm:$0xff]
    %v266 = vld [vmem:[%s5 + $0x8] sm:$0xff]
    %v267 = vmul.f32 %v251, 1.442695
    %v268 = vpow.pop %v267
    %v269 = vmul.f32 %v252, 1.442695
    %v270 = vpow.pop %v269
    %v271 = vmul.f32 %v265, %v251
    %v272 = vmul.f32 %v266, %v252
    %v273 = vsub.f32 %v268, %v271
    %v274 = vsub.f32 %v270, %v272
    %v275 = vsel %vm263, %v273, 0.0
    %v276 = vsel %vm264, %v274, 0.0
    %v277 = vsel %vm253, %v275, 0.0
    %v278 = vsel %vm253, %v276, 0.0
    %v279 = vadd.f32 %v277, %v278
    %v280 = vrot.slane %v279, 4
    %v281 = vadd.f32 %v279, %v280
    %v282 = vrot.slane %v281, 2
    %v283 = vadd.f32 %v281, %v282
    %v284 = vrot.slane %v283, 1
    %v285 = vadd.f32 %v283, %v284
    %vm286 = vcmask 0
    %287 = vst.msk [vmem:[#allocation6] sm:$0x1] %vm286, %v285
    // Predicated region
    $region30: #{tpu_custom_call.1} parent=1 // pred_check
      _
    $region31: #{tpu_custom_call.1} parent=1 // pred_check_branch
      %289 = sbr.rel (0) target = $region33
    $region32: #{tpu_custom_call.1} parent=1 // pred_region
      _
    $region33: #{tpu_custom_call.1} parent=1 // pred_fallthru
      _
    // Predicated region
    $region34: #{tpu_custom_call.1} parent=1 // pred_check
      _
    $region35: #{tpu_custom_call.1} parent=1 // pred_check_branch
      %291 = sbr.rel (0) target = $region37
    $region36: #{tpu_custom_call.1} parent=1 // pred_region
      %s293 = ssub.s32 16, 16
      %294 = vsyncadd [#allocation5], %s293
      %s296 = sshll.u32 [#allocation6], 4
      %s297 = int_to_ptr.vmem [resolvable:$true] %s296
      %299 = dma.vmem_to_hbm [thread:$0]  %s297, 16, %s7, [#allocation5]
    $region37: #{tpu_custom_call.1} parent=1 // pred_fallthru
      _
    // Predicated region
    $region38: #{tpu_custom_call.1} parent=1 // pred_check
      _
    $region39: #{tpu_custom_call.1} parent=1 // pred_check_branch
      %301 = sbr.rel (0) target = $region41
    $region40: #{tpu_custom_call.1} parent=1 // pred_region
      _
    $region41: #{tpu_custom_call.1} parent=1 // pred_fallthru
      _
    // Predicated region
    $region42: #{tpu_custom_call.1} parent=1 // pred_check
      _
    $region43: #{tpu_custom_call.1} parent=1 // pred_check_branch
      %303 = sbr.rel (0) target = $region45
    $region44: #{tpu_custom_call.1} parent=1 // pred_region
      %304 = dma.done [#allocation5], 16
    $region45: #{tpu_custom_call.1} parent=1 // pred_fallthru
      _
    %305 = vsyncpa [#allocation4], 1
    %306 = vsyncpa [#allocation5], 1

</llo_original>
